<compile_context>
chip_gen: v5e
topology: v5e:2x2
jax: 0.10.0
libtpu: 0.0.40
codegen_flags: <defaults>
</compile_context>

<pallas_src>
import functools

import jax
import jax.numpy as jnp
from jax import lax
from jax.experimental import pallas as pl
from jax.experimental.pallas import tpu as pltpu

_LANES = 128
_SUBLANES = 8
_BLOCK_ROWS = 8192          # (8192, 128) f32 block = 4 MiB
_EPS = 1e-4                 # clamped_sigmoid epsilon


def _round_up(a, b):
    return -(-a // b) * b


def _make_focal_kernel(block_rows, n_valid, needs_mask, apply_sigmoid):
    """Kernel closure over static tiling parameters."""

    def fold(v):
        # (block_rows, 128) -> (8, 128): pure VPU adds over full vregs.
        return v.reshape(block_rows // _SUBLANES, _SUBLANES, _LANES).sum(axis=0)

    def kernel(x_ref, t_ref, acc_ref):
        i = pl.program_id(0)

        @pl.when(i == 0)
        def _():
            acc_ref[...] = jnp.zeros_like(acc_ref)

        def compute_and_accumulate(mask_tail):
            x = x_ref[...].astype(jnp.float32)
            t = t_ref[...].astype(jnp.float32)

            if apply_sigmoid:
                # clamped_sigmoid fused in-kernel: exp -> EUP, clip -> 2 VPU ops.
                x = 1.0 / (1.0 + jnp.exp(-x))
                x = jnp.clip(x, _EPS, 1.0 - _EPS)

            pos_inds = (t == 1.0).astype(jnp.float32)
            one_minus_t = 1.0 - t
            sq = one_minus_t * one_minus_t
            neg_weights = sq * sq          # (1 - t)^4 as two VPU muls
            one_minus_x = 1.0 - x

            # NOTE: targets are assumed to lie in [0, 1] (CenterNet heatmaps);
            # (1-t)^4 == 0 at t == 1 makes the reference's explicit (t < 1)
            # indicator redundant, so it is dropped.
            neg_loss = jnp.log(one_minus_x) * (x * x) * neg_weights
            pos_loss = jnp.log(x) * (one_minus_x * one_minus_x) * pos_inds

            if mask_tail:
                # Exact element-level validity: covers both the lane-alignment
                # pad and any out-of-bounds rows of a partial trailing block.
                base = i * (block_rows * _LANES)
                row_iota = lax.broadcasted_iota(
                    jnp.int32, (block_rows, _LANES), 0)
                lane_iota = lax.broadcasted_iota(
                    jnp.int32, (block_rows, _LANES), 1)
                valid = (base + row_iota * _LANES + lane_iota) < n_valid
                zero = jnp.zeros_like(pos_loss)
                # select is lane-wise bit selection: NaN/inf from garbage or
                # padded elements in the unselected branch cannot propagate.
                pos_loss = jnp.where(valid, pos_loss, zero)
                neg_loss = jnp.where(valid, neg_loss, zero)
                pos_inds = jnp.where(valid, pos_inds, zero)

            acc_ref[0] += fold(pos_loss)
            acc_ref[1] += fold(neg_loss)
            acc_ref[2] += fold(pos_inds)

        if needs_mask:
            is_tail = i == pl.num_programs(0) - 1

            @pl.when(is_tail)
            def _():
                compute_and_accumulate(True)

            @pl.when(jnp.logical_not(is_tail))
            def _():
                compute_and_accumulate(False)
        else:
            compute_and_accumulate(False)

    return kernel


def focal_loss(inp, tgt, *, apply_sigmoid=False, block_rows=_BLOCK_ROWS):
    """Pallas FocalLoss.forward.  If apply_sigmoid, `inp` are raw logits and
    clamped_sigmoid is fused into the kernel (saves one full HBM pass)."""
    assert inp.shape == tgt.shape
    n = inp.size

    # Flatten in native dtype; the kernel upcasts to f32 internally.
    x = inp.reshape(-1)
    t = tgt.reshape(-1)

    # Pad to a multiple of 8*128 so the row count is sublane-aligned.  Typical
    # N*C*H*W heatmap sizes are already aligned, so this is usually a no-op.
    tile = _SUBLANES * _LANES
    pad = (-n) % tile
    if pad:
        x = jnp.pad(x, (0, pad))
        t = jnp.pad(t, (0, pad))
    rows = (n + pad) // _LANES
    x = x.reshape(rows, _LANES)
    t = t.reshape(rows, _LANES)

    block_rows = min(_round_up(block_rows, _SUBLANES), rows)
    r = pl.cdiv(rows, block_rows)
    needs_mask = (r * block_rows != rows) or (pad != 0)

    # vmem budget: 2 inputs x 2 pipeline buffers x block bytes, plus headroom.
    itemsize = max(x.dtype.itemsize, t.dtype.itemsize)
    in_bytes = 2 * 2 * block_rows * _LANES * itemsize
    vmem_limit = int(in_bytes + (4 << 20))

    kernel = _make_focal_kernel(block_rows, n, needs_mask, apply_sigmoid)

    acc = pl.pallas_call(
        kernel,
        out_shape=jax.ShapeDtypeStruct((3, _SUBLANES, _LANES), jnp.float32),
        grid_spec=pltpu.PrefetchScalarGridSpec(
            num_scalar_prefetch=0,
            grid=(r,),
            in_specs=[
                pl.BlockSpec((block_rows, _LANES), lambda i: (i, 0)),
                pl.BlockSpec((block_rows, _LANES), lambda i: (i, 0)),
            ],
            out_specs=pl.BlockSpec((3, _SUBLANES, _LANES),
                                   lambda i: (0, 0, 0)),
        ),
        compiler_params=pltpu.CompilerParams(
            dimension_semantics=("arbitrary",),
            vmem_limit_bytes=vmem_limit,
        ),
    )(x, t)

    sums = acc.sum(axis=(1, 2))
    pos_sum, neg_sum, num_pos = sums[0], sums[1], sums[2]
    return jnp.where(num_pos == 0.0,
                     -neg_sum,
                     -(pos_sum + neg_sum) / jnp.maximum(num_pos, 1.0))


# ----------------------------------------------------------------------------
# Pure-JAX references (for correctness checking).
# ----------------------------------------------------------------------------
def clamped_sigmoid(x, eps=_EPS):
    # TODO(synk): clamped_sigmoid is not defined in the provided source; this is
    # the standard CenterNet definition (sigmoid clamped to [eps, 1-eps]).
    return jnp.clip(1.0 / (1.0 + jnp.exp(-x.astype(jnp.float32))),
                    eps, 1.0 - eps)


def _focal_loss_ref(inp, tgt):
    inp = inp.astype(jnp.float32)
    tgt = tgt.astype(jnp.float32)
    pos_inds = (tgt == 1.0).astype(jnp.float32)
    neg_inds = (tgt < 1.0).astype(jnp.float32)
    neg_weights = (1.0 - tgt) ** 4
    omx = 1.0 - inp
    neg_loss = jnp.sum(jnp.log(omx) * inp ** 2 * neg_weights * neg_inds)
    pos_loss = jnp.sum(jnp.log(inp) * omx ** 2 * pos_inds)
    num_pos = jnp.sum(pos_inds)
    return jnp.where(num_pos == 0.0, -neg_loss,
                     -(pos_loss + neg_loss) / jnp.maximum(num_pos, 1.0))


def _focal_loss_logits_ref(logits, tgt):
    return _focal_loss_ref(clamped_sigmoid(logits), tgt)


# ----------------------------------------------------------------------------
# Loss.forward glue: focal heatmap losses (Pallas kernel, sigmoid fused) + L1
# regression losses (tiny, gather-dominated -> plain JAX).
# ----------------------------------------------------------------------------
def _transpose_and_gather(feat, inds):
    n, c, h, w = feat.shape
    flat = jnp.transpose(feat, (0, 2, 3, 1)).reshape(n, h * w, c)
    return jnp.take_along_axis(flat, inds[..., None].astype(jnp.int32), axis=1)


def l1_loss(feat, target, inds, mask):
    numel = jnp.sum(mask)
    preds = _transpose_and_gather(feat, inds)
    loss = jnp.sum(jnp.abs((preds - target) * mask[..., None]))
    return jnp.where(numel == 0, 0.0, loss / jnp.maximum(numel, 1.0))


def loss_forward(inputs, targets, *, hm_weight=1.0, offset_weight=1.0,
                 embedding_weight=1.0, hm_loss_from_logits=None):
    """Reproduces Loss.forward.  `hm_loss_from_logits(logits, target)` applies
    clamped_sigmoid + focal loss (default: fused Pallas kernel)."""
    if hm_loss_from_logits is None:
        hm_loss_from_logits = functools.partial(focal_loss, apply_sigmoid=True)
    hm_loss = hm_weight * (
        hm_loss_from_logits(inputs["anchor_hm"], targets["anchor_hm"])
        + hm_loss_from_logits(inputs["part_hm"], targets["part_hm"]))
    offset_loss = offset_weight * (
        l1_loss(inputs["offsets"], targets["anchor_offsets"],
                targets["anchor_inds"], targets["anchor_mask"])
        + l1_loss(inputs["offsets"], targets["part_offsets"],
                  targets["part_inds"], targets["part_mask"]))
    embedding_loss = embedding_weight * l1_loss(
        inputs["embeddings"], targets["embeddings"],
        targets["part_inds"], targets["part_mask"])
    return hm_loss + offset_loss + embedding_loss


if __name__ == "__main__":
    key = jax.random.PRNGKey(0)
    ks = jax.random.split(key, 32)

    def rand_probs(k, shape):
        return jax.random.uniform(k, shape, jnp.float32,
                                  minval=1e-4, maxval=1.0 - 1e-4)

    def rand_tgt(k1, k2, shape, p=0.98):
        t = jax.random.uniform(k1, shape, jnp.float32, minval=0.0, maxval=0.999)
        return jnp.where(jax.random.uniform(k2, shape) > p, 1.0, t)

    # ---- 1) Aligned single block, probabilities -----------------------------
    shape = (2, 4, 16, 16)
    inp = rand_probs(ks[0], shape)
    tgt = rand_tgt(ks[1], ks[2], shape)
    out = focal_loss(inp, tgt)
    jax.block_until_ready(out)
    ref = _focal_loss_ref(inp, tgt)
    assert jnp.allclose(out, ref, rtol=1e-5, atol=1e-5), ("aligned", out, ref)

    # ---- 2) Multi-block, no tail mask ---------------------------------------
    shape2 = (2, 4, 24, 16)   # 24 rows of 128
    inp2 = rand_probs(ks[3], shape2)
    tgt2 = rand_tgt(ks[4], ks[5], shape2, 0.97)
    out2 = focal_loss(inp2, tgt2, block_rows=8)
    ref2 = _focal_loss_ref(inp2, tgt2)
    assert jnp.allclose(out2, ref2, rtol=1e-5, atol=1e-5), ("multiblock", out2, ref2)

    # ---- 3) Multi-block with partial trailing block (tail mask path) --------
    out2b = focal_loss(inp2, tgt2, block_rows=16)   # 24 rows / block 16 -> r=2
    assert jnp.allclose(out2b, ref2, rtol=1e-5, atol=1e-5), ("partial", out2b, ref2)

    # ---- 4) Non-lane-aligned (pad) single block ------------------------------
    shape3 = (2, 3, 15, 11)   # 990 elements -> padded to 1024
    inp3 = rand_probs(ks[6], shape3)
    tgt3 = rand_tgt(ks[7], ks[8], shape3)
    out3 = focal_loss(inp3, tgt3)
    ref3 = _focal_loss_ref(inp3, tgt3)
    assert jnp.allclose(out3, ref3, rtol=1e-5, atol=1e-5), ("padded", out3, ref3)

    # ---- 5) Pad + multi-block tail mask --------------------------------------
    shape4 = (2, 5, 24, 16)   # 3840 elements -> padded to 4096, 32 rows
    inp4 = rand_probs(ks[9], shape4)
    tgt4 = rand_tgt(ks[10], ks[11], shape4, 0.97)
    out4 = focal_loss(inp4, tgt4, block_rows=8)
    ref4 = _focal_loss_ref(inp4, tgt4)
    assert jnp.allclose(out4, ref4, rtol=1e-5, atol=1e-5), ("pad+multi", out4, ref4)

    # ---- 6) num_pos == 0 path -------------------------------------------------
    tgt0 = jax.random.uniform(ks[12], shape, jnp.float32, minval=0.0, maxval=0.9)
    out0 = focal_loss(inp, tgt0)
    ref0 = _focal_loss_ref(inp, tgt0)
    assert jnp.allclose(out0, ref0, rtol=1e-5, atol=1e-5), ("no-pos", out0, ref0)

    # ---- 7) Fused clamped_sigmoid path (raw logits) ---------------------------
    logits = 3.0 * jax.random.normal(ks[13], shape, jnp.float32)
    out_s = focal_loss(logits, tgt, apply_sigmoid=True)
    ref_s = _focal_loss_logits_ref(logits, tgt)
    assert jnp.allclose(out_s, ref_s, rtol=1e-4, atol=1e-4), ("sigmoid", out_s, ref_s)

    # ---- 8) Full Loss.forward glue --------------------------------------------
    N, C, H, W, K = 2, 4, 16, 16, 8
    inputs = {
        "anchor_hm": jax.random.normal(ks[14], (N, C, H, W), jnp.float32),
        "part_hm": jax.random.normal(ks[15], (N, C, H, W), jnp.float32),
        "offsets": jax.random.normal(ks[16], (N, 2, H, W), jnp.float32),
        "embeddings": jax.random.normal(ks[17], (N, 4, H, W), jnp.float32),
    }
    targets = {
        "anchor_hm": rand_tgt(ks[18], ks[19], (N, C, H, W)),
        "part_hm": rand_tgt(ks[20], ks[21], (N, C, H, W)),
        "anchor_inds": jax.random.randint(ks[22], (N, K), 0, H * W),
        "anchor_mask": (jax.random.uniform(ks[23], (N, K)) > 0.3).astype(jnp.float32),
        "anchor_offsets": jax.random.normal(ks[24], (N, K, 2), jnp.float32),
        "part_inds": jax.random.randint(ks[25], (N, K), 0, H * W),
        "part_mask": (jax.random.uniform(ks[26], (N, K)) > 0.3).astype(jnp.float32),
        "part_offsets": jax.random.normal(ks[27], (N, K, 2), jnp.float32),
        "embeddings": jax.random.normal(ks[28], (N, K, 4), jnp.float32),
    }
    total = loss_forward(inputs, targets, hm_weight=1.0, offset_weight=1.0,
                         embedding_weight=0.1)
    jax.block_until_ready(total)
    total_ref = loss_forward(inputs, targets, hm_weight=1.0, offset_weight=1.0,
                             embedding_weight=0.1,
                             hm_loss_from_logits=_focal_loss_logits_ref)
    assert jnp.allclose(total, total_ref, rtol=1e-4, atol=1e-4), (
        "loss_forward", total, total_ref)

    print("KERNEL_OK")
</pallas_src>

<mosaic_0001>
module attributes {stable_mosaic.version = 11 : i64} {
  func.func @kernel(%arg0: i32, %arg1: memref<16x128xf32, #tpu.memory_space<vmem>>, %arg2: memref<16x128xf32, #tpu.memory_space<vmem>>, %arg3: memref<3x8x128xf32, #tpu.memory_space<vmem>>) attributes {dimension_semantics = [#tpu.dimension_semantics<arbitrary>], iteration_bounds = array<i64: 1>, scalar_prefetch = 0 : i64, scratch_operands = 0 : i64, tpu.core_type = #tpu.core_type<tc>, window_params = [{transform_indices = @transform_0, window_bounds = array<i64: 16, 128>}, {transform_indices = @transform_1, window_bounds = array<i64: 16, 128>}, {pipeline_mode = #tpu.pipeline_mode<synchronous>, transform_indices = @transform_2, window_bounds = array<i64: 3, 8, 128>}]} {
    %c0_i32 = arith.constant 0 : i32
    %0 = arith.cmpi eq, %arg0, %c0_i32 : i32
    %1 = arith.extui %0 : i1 to i32
    %c0_i32_0 = arith.constant 0 : i32
    %2 = arith.cmpi ne, %1, %c0_i32_0 : i32
    scf.if %2 {
      %cst_25 = arith.constant 0.000000e+00 : f32
      %47 = vector.broadcast %cst_25 : f32 to vector<3x8x128xf32>
      %c0_26 = arith.constant 0 : index
      %c0_27 = arith.constant 0 : index
      %c0_28 = arith.constant 0 : index
      %48 = vector.load %arg3[%c0_26, %c0_27, %c0_28] : memref<3x8x128xf32, #tpu.memory_space<vmem>>, vector<3x8x128xf32>
      tpu.vector_store %arg3[%c0_26, %c0_27, %c0_28], %47 {strides = array<i32>} : memref<3x8x128xf32, #tpu.memory_space<vmem>>, vector<3x8x128xf32>,
    } else {
    }
    %c0 = arith.constant 0 : index
    %c0_1 = arith.constant 0 : index
    %3 = vector.load %arg1[%c0, %c0_1] : memref<16x128xf32, #tpu.memory_space<vmem>>, vector<16x128xf32>
    %c0_2 = arith.constant 0 : index
    %c0_3 = arith.constant 0 : index
    %4 = vector.load %arg2[%c0_2, %c0_3] : memref<16x128xf32, #tpu.memory_space<vmem>>, vector<16x128xf32>
    %cst = arith.constant 1.000000e+00 : f32
    %5 = vector.broadcast %cst : f32 to vector<16x128xf32>
    %6 = arith.cmpf oeq, %4, %5 : vector<16x128xf32>
    %7 = arith.extui %6 : vector<16x128xi1> to vector<16x128xi32>
    %8 = arith.sitofp %7 : vector<16x128xi32> to vector<16x128xf32>
    %cst_4 = arith.constant 1.000000e+00 : f32
    %9 = vector.broadcast %cst_4 : f32 to vector<16x128xf32>
    %10 = arith.subf %9, %4 : vector<16x128xf32>
    %11 = arith.mulf %10, %10 : vector<16x128xf32>
    %12 = arith.mulf %11, %11 : vector<16x128xf32>
    %cst_5 = arith.constant 1.000000e+00 : f32
    %13 = vector.broadcast %cst_5 : f32 to vector<16x128xf32>
    %14 = arith.subf %13, %3 : vector<16x128xf32>
    %15 = math.log %14 : vector<16x128xf32>
    %16 = arith.mulf %3, %3 : vector<16x128xf32>
    %17 = arith.mulf %15, %16 : vector<16x128xf32>
    %18 = arith.mulf %17, %12 : vector<16x128xf32>
    %19 = math.log %3 : vector<16x128xf32>
    %20 = arith.mulf %14, %14 : vector<16x128xf32>
    %21 = arith.mulf %19, %20 : vector<16x128xf32>
    %22 = arith.mulf %21, %8 : vector<16x128xf32>
    %c0_6 = arith.constant 0 : index
    %c0_7 = arith.constant 0 : index
    %c0_8 = arith.constant 0 : index
    %23 = vector.load %arg3[%c0_6, %c0_7, %c0_8] : memref<3x8x128xf32, #tpu.memory_space<vmem>>, vector<1x8x128xf32>
    %24 = vector.shape_cast %23 : vector<1x8x128xf32> to vector<8x128xf32>
    %25 = vector.shape_cast %22 : vector<16x128xf32> to vector<2x8x128xf32>
    %cst_9 = arith.constant dense<0.000000e+00> : vector<8x128xf32>
    %26 = vector.multi_reduction <add>, %25, %cst_9 [0] : vector<2x8x128xf32> to vector<8x128xf32>
    %27 = arith.addf %24, %26 : vector<8x128xf32>
    %c0_10 = arith.constant 0 : index
    %c0_11 = arith.constant 0 : index
    %c0_12 = arith.constant 0 : index
    %28 = vector.load %arg3[%c0_10, %c0_11, %c0_12] : memref<3x8x128xf32, #tpu.memory_space<vmem>>, vector<1x8x128xf32>
    %29 = vector.shape_cast %28 : vector<1x8x128xf32> to vector<8x128xf32>
    %30 = vector.shape_cast %27 : vector<8x128xf32> to vector<1x8x128xf32>
    tpu.vector_store %arg3[%c0_10, %c0_11, %c0_12], %30 {strides = array<i32>} : memref<3x8x128xf32, #tpu.memory_space<vmem>>, vector<1x8x128xf32>,
    %c1 = arith.constant 1 : index
    %c0_13 = arith.constant 0 : index
    %c0_14 = arith.constant 0 : index
    %31 = vector.load %arg3[%c1, %c0_13, %c0_14] : memref<3x8x128xf32, #tpu.memory_space<vmem>>, vector<1x8x128xf32>
    %32 = vector.shape_cast %31 : vector<1x8x128xf32> to vector<8x128xf32>
    %33 = vector.shape_cast %18 : vector<16x128xf32> to vector<2x8x128xf32>
    %cst_15 = arith.constant dense<0.000000e+00> : vector<8x128xf32>
    %34 = vector.multi_reduction <add>, %33, %cst_15 [0] : vector<2x8x128xf32> to vector<8x128xf32>
    %35 = arith.addf %32, %34 : vector<8x128xf32>
    %c1_16 = arith.constant 1 : index
    %c0_17 = arith.constant 0 : index
    %c0_18 = arith.constant 0 : index
    %36 = vector.load %arg3[%c1_16, %c0_17, %c0_18] : memref<3x8x128xf32, #tpu.memory_space<vmem>>, vector<1x8x128xf32>
    %37 = vector.shape_cast %36 : vector<1x8x128xf32> to vector<8x128xf32>
    %38 = vector.shape_cast %35 : vector<8x128xf32> to vector<1x8x128xf32>
    tpu.vector_store %arg3[%c1_16, %c0_17, %c0_18], %38 {strides = array<i32>} : memref<3x8x128xf32, #tpu.memory_space<vmem>>, vector<1x8x128xf32>,
    %c2 = arith.constant 2 : index
    %c0_19 = arith.constant 0 : index
    %c0_20 = arith.constant 0 : index
    %39 = vector.load %arg3[%c2, %c0_19, %c0_20] : memref<3x8x128xf32, #tpu.memory_space<vmem>>, vector<1x8x128xf32>
    %40 = vector.shape_cast %39 : vector<1x8x128xf32> to vector<8x128xf32>
    %41 = vector.shape_cast %8 : vector<16x128xf32> to vector<2x8x128xf32>
    %cst_21 = arith.constant dense<0.000000e+00> : vector<8x128xf32>
    %42 = vector.multi_reduction <add>, %41, %cst_21 [0] : vector<2x8x128xf32> to vector<8x128xf32>
    %43 = arith.addf %40, %42 : vector<8x128xf32>
    %c2_22 = arith.constant 2 : index
    %c0_23 = arith.constant 0 : index
    %c0_24 = arith.constant 0 : index
    %44 = vector.load %arg3[%c2_22, %c0_23, %c0_24] : memref<3x8x128xf32, #tpu.memory_space<vmem>>, vector<1x8x128xf32>
    %45 = vector.shape_cast %44 : vector<1x8x128xf32> to vector<8x128xf32>
    %46 = vector.shape_cast %43 : vector<8x128xf32> to vector<1x8x128xf32>
    tpu.vector_store %arg3[%c2_22, %c0_23, %c0_24], %46 {strides = array<i32>} : memref<3x8x128xf32, #tpu.memory_space<vmem>>, vector<1x8x128xf32>,
    return
  }
  func.func @transform_0(%arg0: i32) -> (i32, i32) {
    %c0_i32 = arith.constant 0 : i32
    %c0_i32_0 = arith.constant 0 : i32
    return %arg0, %c0_i32 : i32, i32
  }
  func.func @transform_1(%arg0: i32) -> (i32, i32) {
    %c0_i32 = arith.constant 0 : i32
    %c0_i32_0 = arith.constant 0 : i32
    return %arg0, %c0_i32 : i32, i32
  }
  func.func @transform_2(%arg0: i32) -> (i32, i32, i32) {
    %c0_i32 = arith.constant 0 : i32
    %c0_i32_0 = arith.constant 0 : i32
    %c0_i32_1 = arith.constant 0 : i32
    %c0_i32_2 = arith.constant 0 : i32
    return %c0_i32, %c0_i32_0, %c0_i32_1 : i32, i32, i32
  }
}

</mosaic_0001>

<llo_original>
// kernel: tpu_custom_call.1
$region0: #{tpu_custom_call.1}
  #allocation0 [shape = 'u32[]', space=smem, size = 0x4, offset = 0x4, fixed_abs, tag = 'smem constant byte address 0x4 - core index']
  #allocation1 [shape = 'u32[72,128]{1,0:T(1,128)}', space=vmem, size = 0x9000, scoped, tag = 'internal scratch']
  %s0 = inlined_call_operand.hbm [shape: f32[16,128], index: 0, kind: input, shape index: {}]
  %s1 = inlined_call_operand.hbm [shape: f32[16,128], index: 1, kind: input, shape index: {}]
  %s2 = inlined_call_operand.hbm [shape: f32[3,8,128], index: 2, kind: output, shape index: {}]
  %s3 = sld [smem:[#allocation0]]
  $region30: #{tpu_custom_call.1} parent=0
    _
  %s5 = ssub.s32 1, %s3
  %s6 = scalar_select 0, %s5, %s3
  $region1: #{tpu_custom_call.1} parent=0
    #allocation2 [shape = 'u8[8192]{0}', space=vmem, size = 0x2000, scoped, tag = 'input window, operand 0, single buffered']
    #allocation3 [shape = 's32[1]{0}', space=sflag, size = 0x4, scoped, tag = 'scoped memory for tpu_custom_call.1']
    #allocation4 [shape = 's32[1]{0}', space=sflag, size = 0x4, scoped, tag = 'scoped memory for tpu_custom_call.1']
    #allocation5 [shape = 'u8[8192]{0}', space=vmem, size = 0x2000, scoped, tag = 'input window, operand 1, single buffered']
    #allocation6 [shape = 's32[1]{0}', space=sflag, size = 0x4, scoped, tag = 'scoped memory for tpu_custom_call.1']
    #allocation7 [shape = 'u8[12288]{0}', space=vmem, size = 0x3000, scoped, tag = 'output window, operand 0, single buffered']
    %7 = vsyncpa [#allocation3], 0
    %8 = vsyncpa [#allocation6], 0
    %9 = vsyncpa [#allocation4], 0
    // Predicated region
    $region2: #{tpu_custom_call.1} parent=1 // pred_check
      _
    $region3: #{tpu_custom_call.1} parent=1 // pred_check_branch
      %11 = sbr.rel (0) target = $region5
    $region4: #{tpu_custom_call.1} parent=1 // pred_region
      %13 = vsyncadd [#allocation3], 0
      %s14 = sshll.u32 %s0, 4
      %s15 = int_to_ptr.hbm [resolvable:$true] %s14
      %s16 = sshll.u32 [#allocation2], 4
      %s17 = int_to_ptr.vmem [resolvable:$true] %s16
      %22 = dma.hbm_to_vmem [thread:$0]  %s15, 256, %s17, [#allocation3], 128, 128, 8
    $region5: #{tpu_custom_call.1} parent=1 // pred_fallthru
      _
    // Predicated region
    $region6: #{tpu_custom_call.1} parent=1 // pred_check
      _
    $region7: #{tpu_custom_call.1} parent=1 // pred_check_branch
      %24 = sbr.rel (0) target = $region9
    $region8: #{tpu_custom_call.1} parent=1 // pred_region
      %26 = vsyncadd [#allocation6], 0
      %s27 = sshll.u32 %s1, 4
      %s28 = int_to_ptr.hbm [resolvable:$true] %s27
      %s29 = sshll.u32 [#allocation5], 4
      %s30 = int_to_ptr.vmem [resolvable:$true] %s29
      %35 = dma.hbm_to_vmem [thread:$0]  %s28, 256, %s30, [#allocation6], 128, 128, 8
    $region9: #{tpu_custom_call.1} parent=1 // pred_fallthru
      _
    // Predicated region
    $region10: #{tpu_custom_call.1} parent=1 // pred_check
      _
    $region11: #{tpu_custom_call.1} parent=1 // pred_check_branch
      %37 = sbr.rel (0) target = $region13
    $region12: #{tpu_custom_call.1} parent=1 // pred_region
      %39 = dma.done [#allocation3], 256
    $region13: #{tpu_custom_call.1} parent=1 // pred_fallthru
      _
    // Predicated region
    $region14: #{tpu_custom_call.1} parent=1 // pred_check
      _
    $region15: #{tpu_custom_call.1} parent=1 // pred_check_branch
      %41 = sbr.rel (0) target = $region17
    $region16: #{tpu_custom_call.1} parent=1 // pred_region
      %43 = dma.done [#allocation6], 256
    $region17: #{tpu_custom_call.1} parent=1 // pred_fallthru
      _
    %p44 = scmp.eq.s32.totalorder 0, 0
    // Predicated region
    $region18: #{tpu_custom_call.1} parent=1 // pred_check
      %p45 = pneg %p44
    $region19: #{tpu_custom_call.1} parent=1 // pred_check_branch
      %47 = sbr.rel (%p45) target = $region21
    $region20: #{tpu_custom_call.1} parent=1 // pred_region
      %48 = vst [vmem:[#allocation7] sm:$0xff] 0.0
      %49 = vst [vmem:[#allocation7 + $0x8] sm:$0xff] 0.0
      %50 = vst [vmem:[#allocation7 + $0x10] sm:$0xff] 0.0
    $region21: #{tpu_custom_call.1} parent=1 // pred_fallthru
      _
    %v51 = vld [vmem:[#allocation2] sm:$0xff]
    %v52 = vld [vmem:[#allocation2 + $0x8] sm:$0xff]
    %v53 = vld [vmem:[#allocation5] sm:$0xff]
    %v54 = vld [vmem:[#allocation5 + $0x8] sm:$0xff]
    %vm55 = vcmp.eq.f32.partialorder %v53, 1.0
    %vm56 = vcmp.eq.f32.partialorder %v54, 1.0
    %v57 = vsel %vm55, 1, 0
    %v58 = vsel %vm56, 1, 0
    %v59 = vcvt.s32.f32 %v57
    %v60 = vcvt.s32.f32 %v58
    %v61 = vsub.f32 1.0, %v53
    %v62 = vsub.f32 1.0, %v54
    %v63 = vmul.f32 %v61, %v61
    %v64 = vmul.f32 %v62, %v62
    %v65 = vmul.f32 %v63, %v63
    %v66 = vmul.f32 %v64, %v64
    %v67 = vsub.f32 1.0, %v51
    %v68 = vsub.f32 1.0, %v52
    %v69 = vlog2.pop %v67
    %v70 = vmul.f32 %v69, 0.6931472
    %v71 = vlog2.pop %v68
    %v72 = vmul.f32 %v71, 0.6931472
    %v73 = vmul.f32 %v51, %v51
    %v74 = vmul.f32 %v52, %v52
    %v75 = vmul.f32 %v70, %v73
    %v76 = vmul.f32 %v72, %v74
    %v77 = vmul.f32 %v75, %v65
    %v78 = vmul.f32 %v76, %v66
    %v79 = vlog2.pop %v51
    %v80 = vmul.f32 %v79, 0.6931472
    %v81 = vlog2.pop %v52
    %v82 = vmul.f32 %v81, 0.6931472
    %v83 = vmul.f32 %v67, %v67
    %v84 = vmul.f32 %v68, %v68
    %v85 = vmul.f32 %v80, %v83
    %v86 = vmul.f32 %v82, %v84
    %v87 = vmul.f32 %v85, %v59
    %v88 = vmul.f32 %v86, %v60
    %v89 = vld [vmem:[#allocation7] sm:$0xff]
    %v90 = vadd.f32 %v87, %v88
    %v91 = vadd.f32 %v89, %v90
    %92 = vst [vmem:[#allocation7] sm:$0xff] %v91
    %s93 = scalar_lea.vmem [#allocation7], 8
    %v94 = vld [vmem:[%s93] sm:$0xff]
    %v95 = vadd.f32 %v77, %v78
    %v96 = vadd.f32 %v94, %v95
    %97 = vst [vmem:[%s93] sm:$0xff] %v96
    %s98 = scalar_lea.vmem [#allocation7], 16
    %v99 = vld [vmem:[%s98] sm:$0xff]
    %v100 = vadd.f32 %v59, %v60
    %v101 = vadd.f32 %v99, %v100
    %102 = vst [vmem:[%s98] sm:$0xff] %v101
    // Predicated region
    $region22: #{tpu_custom_call.1} parent=1 // pred_check
      _
    $region23: #{tpu_custom_call.1} parent=1 // pred_check_branch
      %104 = sbr.rel (0) target = $region25
    $region24: #{tpu_custom_call.1} parent=1 // pred_region
      %106 = vsyncadd [#allocation4], 0
      %s107 = sshll.u32 [#allocation7], 4
      %s108 = int_to_ptr.vmem [resolvable:$true] %s107
      %s109 = sshll.u32 %s2, 4
      %s110 = int_to_ptr.hbm [resolvable:$true] %s109
      %115 = dma.vmem_to_hbm [thread:$0]  %s108, 384, %s110, [#allocation4], 128, 128, 8
    $region25: #{tpu_custom_call.1} parent=1 // pred_fallthru
      _
    // Predicated region
    $region26: #{tpu_custom_call.1} parent=1 // pred_check
      _
    $region27: #{tpu_custom_call.1} parent=1 // pred_check_branch
      %117 = sbr.rel (0) target = $region29
    $region28: #{tpu_custom_call.1} parent=1 // pred_region
      %119 = dma.done [#allocation4], 384
    $region29: #{tpu_custom_call.1} parent=1 // pred_fallthru
      _
    %120 = vsyncpa [#allocation3], 1
    %121 = vsyncpa [#allocation6], 1
    %122 = vsyncpa [#allocation4], 1

</llo_original>
